<compile_context>
chip_gen: v6e
topology: v6e:2x2x1
jax: 0.10.0
libtpu: 0.0.40
codegen_flags: <defaults>
</compile_context>

<pallas_src>
import functools

import jax
import jax.numpy as jnp
from jax.experimental import pallas as pl
from jax.experimental.pallas import tpu as pltpu


# -----------------------------------------------------------------------------
# Fused single-block-per-batch kernel (fast path): pool + FiLM MLP + gate.
# -----------------------------------------------------------------------------
def _fused_gate_kernel(x_ref, film_ref, w1_ref, w2_ref, o_ref,
                       *, k, C, Hd, S_total):
    """grid=(B,).

    x_ref    : (1, S_eff, k*C)  lane-packed spatial tile for batch b
    film_ref : (1, 1, 2*Hd+2*C) packed per-batch FiLM [gamma1 | eb1 | gamma2 | eb2]
    w1_ref   : (C, Hd), w2_ref: (Hd, C)  shared MLP weights (f32)
    """
    xf = x_ref[0].astype(jnp.float32)                      # (S_eff, k*C)

    # Both pools on the VPU/XLU — they hide under the input DMA (HBM-bound).
    sum_wide = jnp.sum(xf, axis=0, keepdims=True)          # (1, k*C)
    max_wide = jnp.max(xf, axis=0, keepdims=True)          # (1, k*C)

    # Fold the k lane chunks back to C channels (k-1 single-vreg VPU ops).
    sum_c = sum_wide[:, 0:C]
    max_c = max_wide[:, 0:C]
    for j in range(1, k):
        sum_c = sum_c + sum_wide[:, j * C:(j + 1) * C]
        max_c = jnp.maximum(max_c, max_wide[:, j * C:(j + 1) * C])

    pooled = jnp.concatenate([sum_c * (1.0 / S_total), max_c], axis=0)  # (2, C)

    film = film_ref[0]                                     # (1, 2*Hd + 2*C)
    g1 = film[:, 0:Hd]
    eb1 = film[:, Hd:2 * Hd]
    g2 = film[:, 2 * Hd:2 * Hd + C]
    eb2 = film[:, 2 * Hd + C:2 * Hd + 2 * C]

    # Shared MLP over the stacked [avg; max] rows, FiLM-modulated
    # (layer biases were folded into eb1/eb2 in the wrapper).
    h = jnp.dot(pooled, w1_ref[...], preferred_element_type=jnp.float32)
    h = jnp.maximum(h * g1 + eb1, 0.0)                     # DynamicLinear #1 + ReLU
    y = jnp.dot(h, w2_ref[...], preferred_element_type=jnp.float32)
    y = y * g2 + eb2                                       # DynamicLinear #2
    att = y[0:1, :] + y[1:2, :]                            # channel_att_sum
    scale = jax.nn.sigmoid(att)                            # (1, C) f32
    if k > 1:
        scale = jnp.tile(scale, (1, k))                    # (1, k*C)

    # Gate multiply in the input dtype: only the tiny scale vector is cast,
    # no second full-tile f32 pass (keeps VPU/ld-st slots off the critical path).
    o_ref[0] = x_ref[0] * scale.astype(o_ref.dtype)


# -----------------------------------------------------------------------------
# Tiled two-pass path kernels.
# -----------------------------------------------------------------------------
def _pool_kernel(x_ref, stats_ref, sum_acc, max_acc):
    """grid=(B, n_s). Accumulates per-batch spatial sum/max in VMEM scratch."""
    s = pl.program_id(1)

    @pl.when(s == 0)
    def _init():
        sum_acc[...] = jnp.zeros_like(sum_acc)
        max_acc[...] = jnp.full_like(max_acc, -jnp.inf)

    xf = x_ref[0].astype(jnp.float32)                      # (tile_s, C_eff)
    sum_acc[...] += jnp.sum(xf, axis=0, keepdims=True)
    max_acc[...] = jnp.maximum(max_acc[...], jnp.max(xf, axis=0, keepdims=True))

    @pl.when(s == pl.num_programs(1) - 1)
    def _finalize():
        stats_ref[0] = jnp.concatenate([sum_acc[...], max_acc[...]], axis=0)


def _apply_gate_kernel(x_ref, scale_ref, o_ref):
    """grid=(B, n_s). Pure streaming multiply in the input dtype."""
    o_ref[0] = x_ref[0] * scale_ref[0]


# -----------------------------------------------------------------------------
# Wrapper helpers.
# -----------------------------------------------------------------------------
def _vmem_budget():
    """Generation-aware scoped-VMEM cap and fast-path per-block threshold."""
    phys = 64 << 20                     # conservative default (v7x per-TC VMEM)
    try:
        info = pltpu.get_tpu_info()
        v = int(getattr(info, "vmem_capacity_bytes", 0) or 0)
        if v > 0:
            phys = v
    except Exception:
        pass
    if phys <= (64 << 20):              # v7x: leave headroom for compiler scratch
        return 52 << 20, 12 << 20
    return 100 << 20, 20 << 20          # v5e / v6e: 128 MiB physical


def _choose_tile_s(S_eff, C_eff, itemsize, B, target_bytes=2 << 20, min_steps=8):
    """Largest spatial tile (multiple of 8, divides S_eff) under target_bytes,
    preferring >= min_steps total grid steps for pipeline overlap."""
    cands = [d for d in range(8, S_eff + 1, 8) if S_eff % d == 0]
    if not cands:
        return S_eff                    # full (always-legal) second-to-last dim
    fitting = [d for d in cands if d * C_eff * itemsize <= target_bytes]
    if not fitting:
        return cands[0]
    deep = [d for d in fitting if B * (S_eff // d) >= min_steps]
    return max(deep) if deep else max(fitting)


# -----------------------------------------------------------------------------
# Public entry point.
# -----------------------------------------------------------------------------
def channel_gate(x, mu, p, *, donate_x=False):
    """x: (B, H, W, C) channels-last, mu: (B, T). Returns x * sigmoid(att)."""
    B, H, W, C = x.shape
    S = H * W
    Hd = p["w1"].shape[1]
    f32 = jnp.float32
    itemsize = jnp.dtype(x.dtype).itemsize

    # ---- FiLM conditioning hoisted to XLA (batched M=B matmuls) --------------
    mu32 = mu.astype(f32)
    gamma1 = mu32 @ p["g1"] + p["gb1"]                     # (B, Hd)
    beta1 = mu32 @ p["s1"] + p["sb1"]
    gamma2 = mu32 @ p["g2"] + p["gb2"]                     # (B, C)
    beta2 = mu32 @ p["s2"] + p["sb2"]

    # ---- Lane-dense packing when C < 128 --------------------------------------
    if C < 128 and 128 % C == 0 and S % (128 // C) == 0:
        k = 128 // C
    else:
        # TODO(synk): when C < 128 but S % (128//C) != 0 the output last dim
        # stays < 128 → masked partial stores (correct, slower store path).
        k = 1
    S_eff, C_eff = S // k, k * C
    x3 = x.reshape(B, S_eff, C_eff)

    cap, block_limit = _vmem_budget()
    x_block_bytes = S_eff * C_eff * itemsize
    use_fused = (B >= 8) and (x_block_bytes <= block_limit)

    if use_fused:
        # ---- Fast path: one kernel, x read from HBM once ----------------------
        # Fold layer biases into the FiLM terms: (z@w+b)*g + beta = z@w*g + (b*g+beta)
        eb1 = p["b1"] * gamma1 + beta1                     # (B, Hd)
        eb2 = p["b2"] * gamma2 + beta2                     # (B, C)
        film = jnp.concatenate([gamma1, eb1, gamma2, eb2],
                               axis=1).astype(f32)[:, None, :]   # (B, 1, 2Hd+2C)
        F = 2 * Hd + 2 * C

        kernel = functools.partial(_fused_gate_kernel, k=k, C=C, Hd=Hd, S_total=S)
        need = 4 * x_block_bytes + 8 * (C * Hd + Hd * C + F) + (2 << 20)
        vmem_limit = int(max(32 << 20, min(need, cap)))
        cost = pl.CostEstimate(
            flops=int(3 * B * S * C + 8 * B * C * Hd),
            transcendentals=int(B * C),
            bytes_accessed=int(2 * B * S * C * itemsize + 4 * B * F + 8 * C * Hd))

        out = pl.pallas_call(
            kernel,
            out_shape=jax.ShapeDtypeStruct((B, S_eff, C_eff), x.dtype),
            grid=(B,),
            in_specs=[
                pl.BlockSpec((1, S_eff, C_eff), lambda b: (b, 0, 0)),  # x tile
                pl.BlockSpec((1, 1, F), lambda b: (b, 0, 0)),          # fused FiLM
                pl.BlockSpec((C, Hd), lambda b: (0, 0)),               # w1
                pl.BlockSpec((Hd, C), lambda b: (0, 0)),               # w2
            ],
            out_specs=pl.BlockSpec((1, S_eff, C_eff), lambda b: (b, 0, 0)),
            compiler_params=pltpu.CompilerParams(
                dimension_semantics=("parallel",),
                vmem_limit_bytes=vmem_limit),
            cost_estimate=cost,
            input_output_aliases=({0: 0} if donate_x else {}),
        )(x3, film, p["w1"].astype(f32), p["w2"].astype(f32))
        return out.reshape(B, H, W, C)

    # ---- Tiled two-pass path ---------------------------------------------------
    tile_s = _choose_tile_s(S_eff, C_eff, itemsize, B)
    n_s = S_eff // tile_s
    tile_bytes = tile_s * C_eff * itemsize
    vmem_limit = int(max(32 << 20, min(8 * tile_bytes + (4 << 20), cap)))

    # Pass 1: spatial sum/max pooling, accumulated in VMEM scratch across n_s.
    stats = pl.pallas_call(
        _pool_kernel,
        out_shape=jax.ShapeDtypeStruct((B, 2, C_eff), f32),
        grid=(B, n_s),
        in_specs=[pl.BlockSpec((1, tile_s, C_eff), lambda b, s: (b, s, 0))],
        out_specs=pl.BlockSpec((1, 2, C_eff), lambda b, s: (b, 0, 0)),
        scratch_shapes=[pltpu.VMEM((1, C_eff), f32), pltpu.VMEM((1, C_eff), f32)],
        compiler_params=pltpu.CompilerParams(
            dimension_semantics=("parallel", "arbitrary"),
            vmem_limit_bytes=vmem_limit),
        cost_estimate=pl.CostEstimate(
            flops=int(2 * B * S * C), transcendentals=0,
            bytes_accessed=int(B * S * C * itemsize + 8 * B * C_eff)),
    )(x3)

    # Tiny FiLM MLP + sigmoid on the pooled stats in XLA (~1k FLOPs per batch).
    statsf = stats.reshape(B, 2, k, C)
    avg_c = jnp.sum(statsf[:, 0], axis=1) * (1.0 / S)      # (B, C)
    max_c = jnp.max(statsf[:, 1], axis=1)                  # (B, C)
    pooled = jnp.stack([avg_c, max_c], axis=1)             # (B, 2, C)
    h = pooled @ p["w1"].astype(f32) + p["b1"]
    h = jnp.maximum(h * gamma1[:, None, :] + beta1[:, None, :], 0.0)
    y = h @ p["w2"].astype(f32) + p["b2"]
    y = y * gamma2[:, None, :] + beta2[:, None, :]
    att = y[:, 0] + y[:, 1]                                # channel_att_sum (B, C)
    scale = jax.nn.sigmoid(att)                            # (B, C) f32
    scale_wide = jnp.tile(scale, (1, k)).astype(x.dtype)[:, None, :]   # (B, 1, C_eff)

    # Pass 2: streaming gate multiply; both axes 'parallel' (keeps both v7x TCs busy).
    out = pl.pallas_call(
        _apply_gate_kernel,
        out_shape=jax.ShapeDtypeStruct((B, S_eff, C_eff), x.dtype),
        grid=(B, n_s),
        in_specs=[
            pl.BlockSpec((1, tile_s, C_eff), lambda b, s: (b, s, 0)),
            pl.BlockSpec((1, 1, C_eff), lambda b, s: (b, 0, 0)),
        ],
        out_specs=pl.BlockSpec((1, tile_s, C_eff), lambda b, s: (b, s, 0)),
        compiler_params=pltpu.CompilerParams(
            dimension_semantics=("parallel", "parallel"),
            vmem_limit_bytes=vmem_limit),
        cost_estimate=pl.CostEstimate(
            flops=int(B * S * C), transcendentals=0,
            bytes_accessed=int(2 * B * S * C * itemsize + B * C_eff * itemsize)),
        input_output_aliases=({0: 0} if donate_x else {}),
    )(x3, scale_wide)
    return out.reshape(B, H, W, C)


# -----------------------------------------------------------------------------
# Pure-JAX reference mirroring the PyTorch forward.
# -----------------------------------------------------------------------------
def channel_gate_ref(x, mu, p):
    B, H, W, C = x.shape
    pre = x.reshape(B, -1, C).astype(jnp.float32)
    mu32 = mu.astype(jnp.float32)

    def dl(z, w, b, g, gb, s, sb):
        y = z @ w + b
        return y * (mu32 @ g + gb) + (mu32 @ s + sb)

    def mlp(z):
        h = dl(z, p["w1"], p["b1"], p["g1"], p["gb1"], p["s1"], p["sb1"])
        h = jnp.maximum(h, 0.0)
        return dl(h, p["w2"], p["b2"], p["g2"], p["gb2"], p["s2"], p["sb2"])

    att = mlp(pre.mean(axis=1)) + mlp(pre.max(axis=1))
    scale = jax.nn.sigmoid(att).reshape(B, 1, 1, C)
    return (x.astype(jnp.float32) * scale).astype(x.dtype)


def init_params(key, gate_channels, text_dim, reduction_ratio=16):
    C = gate_channels
    Hd = gate_channels // reduction_ratio
    T = text_dim
    ks = jax.random.split(key, 12)
    sc = 0.1
    return {
        # DynamicLinear #1 : C -> Hd
        "w1": sc * jax.random.normal(ks[0], (C, Hd), jnp.float32),
        "b1": sc * jax.random.normal(ks[1], (1, Hd), jnp.float32),
        "g1": sc * jax.random.normal(ks[2], (T, Hd), jnp.float32),
        "gb1": 1.0 + sc * jax.random.normal(ks[3], (1, Hd), jnp.float32),
        "s1": sc * jax.random.normal(ks[4], (T, Hd), jnp.float32),
        "sb1": sc * jax.random.normal(ks[5], (1, Hd), jnp.float32),
        # DynamicLinear #2 : Hd -> C
        "w2": sc * jax.random.normal(ks[6], (Hd, C), jnp.float32),
        "b2": sc * jax.random.normal(ks[7], (1, C), jnp.float32),
        "g2": sc * jax.random.normal(ks[8], (T, C), jnp.float32),
        "gb2": 1.0 + sc * jax.random.normal(ks[9], (1, C), jnp.float32),
        "s2": sc * jax.random.normal(ks[10], (T, C), jnp.float32),
        "sb2": sc * jax.random.normal(ks[11], (1, C), jnp.float32),
    }


if __name__ == "__main__":
    key = jax.random.PRNGKey(0)
    kp, kx1, km1, kx2, km2 = jax.random.split(key, 5)

    gate_channels, text_dim, reduction_ratio = 64, 16, 16
    params = init_params(kp, gate_channels, text_dim, reduction_ratio)

    # Case 1: small batch -> tiled two-pass path (pool kernel + XLA MLP + gate kernel).
    x_a = jax.random.normal(kx1, (2, 8, 8, gate_channels), jnp.float32)
    mu_a = jax.random.normal(km1, (2, text_dim), jnp.float32)
    out_a = jax.block_until_ready(channel_gate(x_a, mu_a, params))
    ref_a = channel_gate_ref(x_a, mu_a, params)
    assert out_a.shape == x_a.shape and out_a.dtype == x_a.dtype
    assert jnp.allclose(out_a, ref_a, atol=1e-5, rtol=1e-5), "tiled path mismatch"

    # Case 2: B >= 8, small per-batch block -> fused single-kernel fast path.
    x_b = jax.random.normal(kx2, (8, 4, 4, gate_channels), jnp.float32)
    mu_b = jax.random.normal(km2, (8, text_dim), jnp.float32)
    out_b = jax.block_until_ready(channel_gate(x_b, mu_b, params))
    ref_b = channel_gate_ref(x_b, mu_b, params)
    assert out_b.shape == x_b.shape and out_b.dtype == x_b.dtype
    assert jnp.allclose(out_b, ref_b, atol=1e-5, rtol=1e-5), "fused path mismatch"

    print("KERNEL_OK")
</pallas_src>

<mosaic_0001>
module attributes {stable_mosaic.version = 11 : i64} {
  func.func @_pool_kernel(%arg0: i32, %arg1: i32, %arg2: memref<1x8x128xf32, #tpu.memory_space<vmem>>, %arg3: memref<1x2x128xf32, #tpu.memory_space<vmem>>, %arg4: memref<1x128xf32, #tpu.memory_space<vmem>>, %arg5: memref<1x128xf32, #tpu.memory_space<vmem>>) attributes {dimension_semantics = [#tpu.dimension_semantics<parallel>, #tpu.dimension_semantics<arbitrary>], iteration_bounds = array<i64: 2, 4>, scalar_prefetch = 0 : i64, scratch_operands = 2 : i64, tpu.core_type = #tpu.core_type<tc>, window_params = [{transform_indices = @transform_0, window_bounds = array<i64: 1, 8, 128>}, {transform_indices = @transform_1, window_bounds = array<i64: 1, 2, 128>}]} {
    %c0_i32 = arith.constant 0 : i32
    %0 = arith.cmpi eq, %arg1, %c0_i32 : i32
    %1 = arith.extui %0 : i1 to i32
    %c0_i32_0 = arith.constant 0 : i32
    %2 = arith.cmpi ne, %1, %c0_i32_0 : i32
    scf.if %2 {
      %cst_13 = arith.constant 0.000000e+00 : f32
      %18 = vector.broadcast %cst_13 : f32 to vector<1x128xf32>
      %c0_14 = arith.constant 0 : index
      %c0_15 = arith.constant 0 : index
      %19 = vector.load %arg4[%c0_14, %c0_15] : memref<1x128xf32, #tpu.memory_space<vmem>>, vector<1x128xf32>
      tpu.vector_store %arg4[%c0_14, %c0_15], %18 {strides = array<i32>} : memref<1x128xf32, #tpu.memory_space<vmem>>, vector<1x128xf32>,
      %cst_16 = arith.constant 0xFF800000 : f32
      %20 = vector.broadcast %cst_16 : f32 to vector<1x128xf32>
      %c0_17 = arith.constant 0 : index
      %c0_18 = arith.constant 0 : index
      %21 = vector.load %arg5[%c0_17, %c0_18] : memref<1x128xf32, #tpu.memory_space<vmem>>, vector<1x128xf32>
      tpu.vector_store %arg5[%c0_17, %c0_18], %20 {strides = array<i32>} : memref<1x128xf32, #tpu.memory_space<vmem>>, vector<1x128xf32>,
    } else {
    }
    %c0 = arith.constant 0 : index
    %c0_1 = arith.constant 0 : index
    %c0_2 = arith.constant 0 : index
    %3 = vector.load %arg2[%c0, %c0_1, %c0_2] : memref<1x8x128xf32, #tpu.memory_space<vmem>>, vector<1x8x128xf32>
    %4 = vector.shape_cast %3 : vector<1x8x128xf32> to vector<8x128xf32>
    %c0_3 = arith.constant 0 : index
    %c0_4 = arith.constant 0 : index
    %5 = vector.load %arg4[%c0_3, %c0_4] : memref<1x128xf32, #tpu.memory_space<vmem>>, vector<1x128xf32>
    %cst = arith.constant dense<0.000000e+00> : vector<128xf32>
    %6 = vector.multi_reduction <add>, %4, %cst [0] : vector<8x128xf32> to vector<128xf32>
    %7 = vector.shape_cast %6 : vector<128xf32> to vector<1x128xf32>
    %8 = arith.addf %5, %7 : vector<1x128xf32>
    %c0_5 = arith.constant 0 : index
    %c0_6 = arith.constant 0 : index
    %9 = vector.load %arg4[%c0_5, %c0_6] : memref<1x128xf32, #tpu.memory_space<vmem>>, vector<1x128xf32>
    tpu.vector_store %arg4[%c0_5, %c0_6], %8 {strides = array<i32>} : memref<1x128xf32, #tpu.memory_space<vmem>>, vector<1x128xf32>,
    %c0_7 = arith.constant 0 : index
    %c0_8 = arith.constant 0 : index
    %10 = vector.load %arg5[%c0_7, %c0_8] : memref<1x128xf32, #tpu.memory_space<vmem>>, vector<1x128xf32>
    %cst_9 = arith.constant dense<0xFF800000> : vector<128xf32>
    %11 = vector.multi_reduction <maximumf>, %4, %cst_9 [0] : vector<8x128xf32> to vector<128xf32>
    %12 = vector.shape_cast %11 : vector<128xf32> to vector<1x128xf32>
    %13 = arith.maximumf %10, %12 : vector<1x128xf32>
    %c0_10 = arith.constant 0 : index
    %c0_11 = arith.constant 0 : index
    %14 = vector.load %arg5[%c0_10, %c0_11] : memref<1x128xf32, #tpu.memory_space<vmem>>, vector<1x128xf32>
    tpu.vector_store %arg5[%c0_10, %c0_11], %13 {strides = array<i32>} : memref<1x128xf32, #tpu.memory_space<vmem>>, vector<1x128xf32>,
    %c3_i32 = arith.constant 3 : i32
    %15 = arith.cmpi eq, %arg1, %c3_i32 : i32
    %16 = arith.extui %15 : i1 to i32
    %c0_i32_12 = arith.constant 0 : i32
    %17 = arith.cmpi ne, %16, %c0_i32_12 : i32
    scf.if %17 {
      %c0_13 = arith.constant 0 : index
      %c0_14 = arith.constant 0 : index
      %18 = vector.load %arg4[%c0_13, %c0_14] : memref<1x128xf32, #tpu.memory_space<vmem>>, vector<1x128xf32>
      %c0_15 = arith.constant 0 : index
      %c0_16 = arith.constant 0 : index
      %19 = vector.load %arg5[%c0_15, %c0_16] : memref<1x128xf32, #tpu.memory_space<vmem>>, vector<1x128xf32>
      %20 = tpu.concatenate %18, %19 in 0 : vector<1x128xf32>, vector<1x128xf32> -> vector<2x128xf32>
      %c0_17 = arith.constant 0 : index
      %c0_18 = arith.constant 0 : index
      %c0_19 = arith.constant 0 : index
      %21 = vector.load %arg3[%c0_17, %c0_18, %c0_19] : memref<1x2x128xf32, #tpu.memory_space<vmem>>, vector<1x2x128xf32>
      %22 = vector.shape_cast %21 : vector<1x2x128xf32> to vector<2x128xf32>
      %23 = vector.shape_cast %20 : vector<2x128xf32> to vector<1x2x128xf32>
      tpu.vector_store %arg3[%c0_17, %c0_18, %c0_19], %23 {strides = array<i32>} : memref<1x2x128xf32, #tpu.memory_space<vmem>>, vector<1x2x128xf32>,
    } else {
    }
    return
  }
  func.func @transform_0(%arg0: i32, %arg1: i32) -> (i32, i32, i32) {
    %c0_i32 = arith.constant 0 : i32
    %c0_i32_0 = arith.constant 0 : i32
    return %arg0, %arg1, %c0_i32 : i32, i32, i32
  }
  func.func @transform_1(%arg0: i32, %arg1: i32) -> (i32, i32, i32) {
    %c0_i32 = arith.constant 0 : i32
    %c0_i32_0 = arith.constant 0 : i32
    %c0_i32_1 = arith.constant 0 : i32
    return %arg0, %c0_i32, %c0_i32_0 : i32, i32, i32
  }
}

</mosaic_0001>

<llo_original>
// kernel: tpu_custom_call.1
$region0: #{tpu_custom_call.1}
  #allocation0 [shape = 'u32[]', space=smem, size = 0x4, offset = 0x4, fixed_abs, tag = 'smem constant byte address 0x4 - core index']
  #allocation1 [shape = 'u32[144,128]{1,0:T(1,128)}', space=vmem, size = 0x12000, scoped, tag = 'internal scratch']
  #allocation2 [shape = 'f32[1,128]{1,0:T(1,128)}', space=vmem, size = 0x200, scoped, tag = 'scratch operand']
  #allocation3 [shape = 'f32[1,128]{1,0:T(1,128)}', space=vmem, size = 0x200, scoped, tag = 'scratch operand']
  %s0 = inlined_call_operand.hbm [shape: f32[2,32,128], index: 0, kind: input, shape index: {}]
  %s1 = inlined_call_operand.hbm [shape: f32[2,2,128], index: 1, kind: output, shape index: {}]
  %s2 = sld [smem:[#allocation0]]
  $region49: #{tpu_custom_call.1} parent=0
    _
  %s4 = ssub.s32 1, %s2
  %s5 = scalar_select 0, %s4, %s2
  $region1: #{tpu_custom_call.1} parent=0
    #allocation4 [shape = 'u8[8192]{0}', space=vmem, size = 0x2000, scoped, tag = 'input window, operand 0']
    #allocation5 [shape = 's32[2]{0}', space=sflag, size = 0x8, scoped, tag = 'scoped memory for tpu_custom_call.1']
    #allocation6 [shape = 's32[2]{0}', space=sflag, size = 0x8, scoped, tag = 'scoped memory for tpu_custom_call.1']
    #allocation7 [shape = 'u8[2048]{0}', space=vmem, size = 0x800, scoped, tag = 'output window, operand 0']
    %6 = vsyncpa [#allocation5], 0
    %s7 = scalar_lea.sflag [#allocation5], 1
    %8 = vsyncpa %s7, 0
    %9 = vsyncpa [#allocation6], 0
    %s10 = scalar_lea.sflag [#allocation6], 1
    %11 = vsyncpa %s10, 0
    loop: start=0, step=1, limit=10
    $region2: #{tpu_custom_call.1} parent=1 // loop_pre_header
      _
    $region3: #{tpu_custom_call.1} parent=1 // loop_header
      %s13 = sphi 0, %s17
      %p14 = scmp.ge.s32.totalorder %s13, 10
      %s20 = sphi 0, %s32
      %s21 = sphi 0, %s28
      %s22 = sphi 0, %s20
      %s23 = sphi 0, %s21
      %s24 = sphi 0, %s22
      %s25 = sphi 0, %s23
      %s37 = sphi 0, %s39
      %s40 = sphi 0, %s37
      %s41 = sphi 0, %s40
      %s57 = sphi 0, %s41
      %s63 = sphi 0, %s65
      %s66 = sphi 0, %s63
      %s67 = sphi 0, %s66
      %s83 = sphi 0, %s67
    $region4: #{tpu_custom_call.1} parent=1 // loop_header_branch
      %16 = sbr.rel (%p14) target = $region8
    $region5: #{tpu_custom_call.1} parent=1 // loop_body
      %s18 = ssub.s32 %s13, 1
      %s19 = ssub.s32 %s13, 2
      %s26 = sadd.s32 1, %s21
      %p27 = scmp.ge.s32.totalorder %s26, 4
      %s28 = scalar_select %p27, 0, %s26
      %s29 = sadd.s32 1, %s20
      %s30 = scalar_select %p27, %s29, %s20
      %p31 = scmp.ge.s32.totalorder %s30, 2
      %s32 = scalar_select %p31, 0, %s30
      %s33 = ssub.s32 %s20, %s32
      %s34 = ssub.s32 %s21, %s28
      %s35 = sor.u32 %s33, %s34
      %p36 = scmp.eq.s32.totalorder %s35, 0
      %s38 = sadd.s32 %s37, 1
      %s39 = scalar_select %p36, %s37, %s38
      %p42 = pneg %p36
      %p43 = scmp.eq.s32.totalorder %s13, 7
      %p44 = por %p42, %p43
      %p45 = scmp.ne.s32.totalorder %s37, %s40
      %p46 = scmp.eq.s32.totalorder %s13, 0
      %p47 = por %p45, %p46
      %p48 = scmp.ne.s32.totalorder %s37, %s40
      %p49 = scmp.eq.s32.totalorder %s18, 7
      %p50 = por %p48, %p49
      %p51 = scmp.ne.s32.totalorder %s40, %s41
      %p52 = scmp.eq.s32.totalorder %s18, 0
      %p53 = por %p51, %p52
      %p54 = scmp.ne.s32.totalorder %s40, %s41
      %p55 = scmp.eq.s32.totalorder %s19, 7
      %p56 = por %p54, %p55
      %p58 = scmp.ne.s32.totalorder %s41, %s57
      %p59 = scmp.eq.s32.totalorder %s19, 0
      %p60 = por %p58, %p59
      %s61 = ssub.s32 %s20, %s32
      %p62 = scmp.eq.s32.totalorder %s61, 0
      %s64 = sadd.s32 %s63, 1
      %s65 = scalar_select %p62, %s63, %s64
      %p68 = pneg %p62
      %p69 = scmp.eq.s32.totalorder %s13, 7
      %p70 = por %p68, %p69
      %p71 = scmp.ne.s32.totalorder %s63, %s66
      %p72 = scmp.eq.s32.totalorder %s13, 0
      %p73 = por %p71, %p72
      %p74 = scmp.ne.s32.totalorder %s63, %s66
      %p75 = scmp.eq.s32.totalorder %s18, 7
      %p76 = por %p74, %p75
      %p77 = scmp.ne.s32.totalorder %s66, %s67
      %p78 = scmp.eq.s32.totalorder %s18, 0
      %p79 = por %p77, %p78
      %p80 = scmp.ne.s32.totalorder %s66, %s67
      %p81 = scmp.eq.s32.totalorder %s19, 7
      %p82 = por %p80, %p81
      %p84 = scmp.ne.s32.totalorder %s67, %s83
      %p85 = scmp.eq.s32.totalorder %s19, 0
      %p86 = por %p84, %p85
      %p87 = scmp.le.s32.totalorder 1, %s13
      %p88 = scmp.lt.s32.totalorder %s13, 9
      %p89 = pnand %p87, %p88
      %p90 = pneg %p89
      // Predicated region
      $region9: #{tpu_custom_call.1} parent=5 // pred_check
        _
      $region10: #{tpu_custom_call.1} parent=5 // pred_check_branch
        %92 = sbr.rel (%p89) target = $region12
      $region11: #{tpu_custom_call.1} parent=5 // pred_region
        %s93 = ssub.s32 %s13, 1
      $region12: #{tpu_custom_call.1} parent=5 // pred_fallthru
        _
      %p94 = scmp.lt.s32.totalorder %s13, 8
      // Predicated region
      $region13: #{tpu_custom_call.1} parent=5 // pred_check
        %p95 = pneg %p94
      $region14: #{tpu_custom_call.1} parent=5 // pred_check_branch
        %97 = sbr.rel (%p95) target = $region16
      $region15: #{tpu_custom_call.1} parent=5 // pred_region
        // Predicated region
        $region17: #{tpu_custom_call.1} parent=15 // pred_check
          %p98 = pneg %p47
        $region18: #{tpu_custom_call.1} parent=15 // pred_check_branch
          %100 = sbr.rel (%p98) target = $region20
        $region19: #{tpu_custom_call.1} parent=15 // pred_region
          %s101 = sand.u32 %s37, 1
          %s102 = scalar_lea.sflag [#allocation5], %s101
          %s103 = sand.u32 %s37, 1
          %s104 = smul.addr %s103, 8
          %s105 = scalar_lea.vmem [#allocation4], %s104
          %s107 = ssub.s32 128, 128
          %108 = vsyncadd %s102, %s107
          %s109 = smul.addr %s20, 4
          %s110 = sadd.s32 %s21, %s109
          %s111 = smul.addr %s110, 128
          %s112 = scalar_lea.hbm %s0, %s111
          %s114 = sshll.u32 %s105, 4
          %s115 = int_to_ptr.vmem [resolvable:$true] %s114
          %117 = dma.hbm_to_vmem [thread:$0]  %s112, 128, %s115, %s102
        $region20: #{tpu_custom_call.1} parent=15 // pred_fallthru
          _
      $region16: #{tpu_custom_call.1} parent=5 // pred_fallthru
        _
      %p118 = scmp.le.s32.totalorder 1, %s13
      %p119 = scmp.lt.s32.totalorder %s13, 9
      %p120 = pnand %p118, %p119
      %p121 = pneg %p120
      // Predicated region
      $region21: #{tpu_custom_call.1} parent=5 // pred_check
        _
      $region22: #{tpu_custom_call.1} parent=5 // pred_check_branch
        %123 = sbr.rel (%p120) target = $region24
      $region23: #{tpu_custom_call.1} parent=5 // pred_region
        %s124 = ssub.s32 %s13, 1
        %s125 = sand.u32 %s40, 1
        %s126 = scalar_lea.sflag [#allocation5], %s125
        %s127 = sand.u32 %s40, 1
        %s128 = smul.addr %s127, 8
        %s129 = scalar_lea.vmem [#allocation4], %s128
        // Predicated region
        $region25: #{tpu_custom_call.1} parent=23 // pred_check
          %p130 = pneg %p53
        $region26: #{tpu_custom_call.1} parent=23 // pred_check_branch
          %132 = sbr.rel (%p130) target = $region28
        $region27: #{tpu_custom_call.1} parent=23 // pred_region
          %133 = dma.done %s126, 128
        $region28: #{tpu_custom_call.1} parent=23 // pred_fallthru
          _
        %s134 = sand.u32 %s40, 1
        %s135 = scalar_lea.sflag [#allocation5], %s134
        %s136 = sand.u32 %s40, 1
        %s137 = smul.addr %s136, 8
        %s138 = scalar_lea.vmem [#allocation4], %s137
        %p139 = pneg %p53
        %p140 = pneg %p50
        %p141 = pneg %p79
        %p142 = pneg %p76
        %s143 = sand.u32 %s66, 1
        %s144 = scalar_lea.sflag [#allocation6], %s143
        %s145 = sand.u32 %s66, 1
        %s146 = smul.addr %s145, 2
        %s147 = scalar_lea.vmem [#allocation7], %s146
        %p148 = scmp.eq.s32.totalorder %s23, 0
        // Predicated region
        $region29: #{tpu_custom_call.1} parent=23 // pred_check
          %p149 = pneg %p148
        $region30: #{tpu_custom_call.1} parent=23 // pred_check_branch
          %151 = sbr.rel (%p149) target = $region32
        $region31: #{tpu_custom_call.1} parent=23 // pred_region
          %152 = vst [vmem:[#allocation2] sm:$0x1] 0.0
          %153 = vst [vmem:[#allocation3] sm:$0x1] -inf
        $region32: #{tpu_custom_call.1} parent=23 // pred_fallthru
          _
        %v154 = vld [vmem:[%s129] sm:$0xff]
        %v155 = vld [vmem:[#allocation2] sm:$0x1]
        %v156 = vrot.slane %v154, 4
        %v157 = vadd.f32 %v154, %v156
        %v158 = vrot.slane %v157, 2
        %v159 = vadd.f32 %v157, %v158
        %v160 = vrot.slane %v159, 1
        %v161 = vadd.f32 %v159, %v160
        %v162 = vadd.f32 %v155, %v161
        %163 = vst [vmem:[#allocation2] sm:$0x1] %v162
        %v164 = vld [vmem:[#allocation3] sm:$0x1]
        %v165 = vrot.slane %v154, 4
        %v166 = vmax.f32 %v154, %v165
        %v167 = vrot.slane %v166, 2
        %v168 = vmax.f32 %v166, %v167
        %v169 = vrot.slane %v168, 1
        %v170 = vmax.f32 %v168, %v169
        %v171 = vmax.f32 %v164, %v170
        %172 = vst [vmem:[#allocation3] sm:$0x1] %v171
        %p173 = scmp.eq.s32.totalorder %s23, 3
        // Predicated region
        $region33: #{tpu_custom_call.1} parent=23 // pred_check
          %p174 = pneg %p173
        $region34: #{tpu_custom_call.1} parent=23 // pred_check_branch
          %176 = sbr.rel (%p174) target = $region36
        $region35: #{tpu_custom_call.1} parent=23 // pred_region
          %v177 = vld [vmem:[#allocation2] sm:$0x1]
          %v178 = vld [vmem:[#allocation3] sm:$0x1]
          %v180 = vlaneseq
          %v181 = vshrl.u32 %v180, 7
          %v182 = vsub.s32 0, %v181
          %v183 = vrot.slane %v178, %v182
          %vm185 = vcmask 1040384
          %v186 = vsel %vm185, %v177, %v183
          %187 = vst [vmem:[%s147] sm:$0x3] %v186
        $region36: #{tpu_custom_call.1} parent=23 // pred_fallthru
          _
        %s188 = sand.u32 %s66, 1
        %s189 = scalar_lea.sflag [#allocation6], %s188
        %s190 = sand.u32 %s66, 1
        %s191 = smul.addr %s190, 2
        %s192 = scalar_lea.vmem [#allocation7], %s191
        // Predicated region
        $region37: #{tpu_custom_call.1} parent=23 // pred_check
          %p193 = pneg %p76
        $region38: #{tpu_custom_call.1} parent=23 // pred_check_branch
          %195 = sbr.rel (%p193) target = $region40
        $region39: #{tpu_custom_call.1} parent=23 // pred_region
          %s197 = ssub.s32 32, 32
          %198 = vsyncadd %s189, %s197
          %s199 = smul.addr %s22, 32
          %s200 = scalar_lea.hbm %s1, %s199
          %s202 = sshll.u32 %s192, 4
          %s203 = int_to_ptr.vmem [resolvable:$true] %s202
          %205 = dma.vmem_to_hbm [thread:$0]  %s203, 32, %s200, %s189
        $region40: #{tpu_custom_call.1} parent=23 // pred_fallthru
          _
      $region24: #{tpu_custom_call.1} parent=5 // pred_fallthru
        _
      %p206 = scmp.le.s32.totalorder 2, %s13
      // Predicated region
      $region41: #{tpu_custom_call.1} parent=5 // pred_check
        %p207 = pneg %p206
      $region42: #{tpu_custom_call.1} parent=5 // pred_check_branch
        %209 = sbr.rel (%p207) target = $region44
      $region43: #{tpu_custom_call.1} parent=5 // pred_region
        %s210 = ssub.s32 %s13, 2
        // Predicated region
        $region45: #{tpu_custom_call.1} parent=43 // pred_check
          %p211 = pneg %p82
        $region46: #{tpu_custom_call.1} parent=43 // pred_check_branch
          %213 = sbr.rel (%p211) target = $region48
        $region47: #{tpu_custom_call.1} parent=43 // pred_region
          %s214 = sand.u32 %s67, 1
          %s215 = scalar_lea.sflag [#allocation6], %s214
          %s216 = sand.u32 %s67, 1
          %s217 = smul.addr %s216, 2
          %s218 = scalar_lea.vmem [#allocation7], %s217
          %219 = dma.done %s215, 32
        $region48: #{tpu_custom_call.1} parent=43 // pred_fallthru
          _
      $region44: #{tpu_custom_call.1} parent=5 // pred_fallthru
        _
    $region6: #{tpu_custom_call.1} parent=1 // loop_footer
      %s17 = sadd.s32 1, %s13
    $region7: #{tpu_custom_call.1} parent=1 // loop_footer_branch
      %12 = sbr.rel target = $region3
    $region8: #{tpu_custom_call.1} parent=1 // loop_exit
      _
    %220 = vsyncpa [#allocation5], 1
    %s221 = scalar_lea.sflag [#allocation5], 1
    %222 = vsyncpa %s221, 1
    %223 = vsyncpa [#allocation6], 1
    %s224 = scalar_lea.sflag [#allocation6], 1
    %225 = vsyncpa %s224, 1

</llo_original>
